<compile_context>
chip_gen: v6e
topology: v6e:2x2x1
jax: 0.10.0
libtpu: 0.0.40
codegen_flags: <defaults>
</compile_context>

<pallas_src>
import functools

import jax
import jax.numpy as jnp
from jax import lax
from jax.experimental import pallas as pl
from jax.experimental.pallas import tpu as pltpu


# ---------------------------------------------------------------------------
# Pallas kernels
# ---------------------------------------------------------------------------

def _stats_kernel(x_ref, gram_ref, sum_ref):
    """Per-tile f32 moments of the (C, ts) input slab (lane-dense contraction)."""
    x = x_ref[...].astype(jnp.float32)                           # (C, ts)
    # Gram over the lane-dense spatial axis: (C, ts) . (C, ts)^T -> (C, C), MXU.
    gram_ref[...] = lax.dot_general(
        x, x, (((1,), (1,)), ((), ())), preferred_element_type=jnp.float32)
    # Column sums (XLU lane reduce) for the mean.
    sum_ref[...] = jnp.sum(x, axis=1, keepdims=True)             # (C, 1)


def _apply_kernel(x_ref, w1_ref, shift_ref, w2_ref, b2_ref, out_ref, *,
                  compute_dtype):
    """conv1 (BN scale pre-folded into W1) + shift + ReLU + conv2, NCHW layout."""
    x = x_ref[...].astype(compute_dtype)                          # (C, ts)
    y1 = jnp.dot(w1_ref[...], x,
                 preferred_element_type=jnp.float32)              # (ndf, ts) f32
    yr = jnp.maximum(y1 + shift_ref[...], 0.0)                    # BN shift + ReLU
    y2 = jnp.dot(w2_ref[...], yr.astype(compute_dtype),
                 preferred_element_type=jnp.float32)              # (out_c, ts)
    out_ref[...] = (y2 + b2_ref[...]).astype(out_ref.dtype)


# ---------------------------------------------------------------------------
# Wrapper
# ---------------------------------------------------------------------------

def _round_up(v, m):
    return ((v + m - 1) // m) * m


def _pick_spatial_tile(hw, target):
    """Spatial tile (multiple of 128 lanes), tile count, padded spatial size."""
    n_tiles = max(1, pl.cdiv(hw, target))
    ts = _round_up(pl.cdiv(hw, n_tiles), 128)
    return ts, n_tiles, n_tiles * ts


def project_head_forward(x_nchw, params, *, spatial_tile=2048, eps=1e-5,
                         compute_dtype=jnp.float32, out_dtype=jnp.float32):
    """Pallas forward for ProjectHead. x_nchw: (N, class_num, H, W) float32.

    compute_dtype=jnp.bfloat16 runs both matmuls on the bf16 MXU path (fine on
    v5e/v6e/v7x; BN statistics are always computed in f32 from f32 x).
    out_dtype=jnp.bfloat16 halves the dominant HBM output write stream.
    """
    w1, b1, gamma, beta, w2, b2 = (params["w1"], params["b1"], params["gamma"],
                                   params["beta"], params["w2"], params["b2"])
    N, C, H, W = x_nchw.shape
    ndf = w1.shape[0]
    out_c = w2.shape[0]
    hw = H * W
    m_total = N * hw

    ts, k, hwp = _pick_spatial_tile(hw, spatial_tile)

    # (N, C, H, W) -> (N, C, H*W): pure reshape, no transpose / relayout.
    x3 = x_nchw.reshape(N, C, hw)
    if hwp != hw:
        # Zero-pad the spatial axis: pad columns contribute 0 to the Gram and
        # sums (stats stay exact since m_total is the real count) and their
        # outputs are sliced off below.
        x3 = jnp.pad(x3, ((0, 0), (0, 0), (0, hwp - hw)))

    grid = (N, k)
    x_spec = pl.BlockSpec((None, C, ts), lambda n, t: (n, 0, t))
    const2 = lambda n, t: (0, 0)

    # ----- pass 1: per-tile moments (f32 Gram over the lane-dense axis) ------
    gram, sums = pl.pallas_call(
        _stats_kernel,
        out_shape=(jax.ShapeDtypeStruct((N, k, C, C), jnp.float32),
                   jax.ShapeDtypeStruct((N, k, C, 1), jnp.float32)),
        grid_spec=pltpu.PrefetchScalarGridSpec(
            num_scalar_prefetch=0,
            grid=grid,
            in_specs=[x_spec],
            out_specs=(
                pl.BlockSpec((None, None, C, C), lambda n, t: (n, t, 0, 0)),
                pl.BlockSpec((None, None, C, 1), lambda n, t: (n, t, 0, 0)),
            ),
        ),
        compiler_params=pltpu.CompilerParams(
            dimension_semantics=("parallel", "parallel"),
            vmem_limit_bytes=8 * 1024 * 1024,
        ),
    )(x3)

    # ----- BN statistics finalize (tiny, pure JAX, f32) -----------------------
    # TODO(synk): BatchNorm2d running_mean/var momentum buffer updates (training
    # side effect, not part of forward's return value) are not emitted.
    g = jnp.sum(gram, axis=(0, 1))                        # (C, C)  sum x x^T
    sx = jnp.sum(sums, axis=(0, 1))[:, 0]                 # (C,)    sum x
    mean_x = sx / m_total
    cov_x = g / m_total - jnp.outer(mean_x, mean_x)       # biased covariance
    mean_y1 = w1 @ mean_x + b1                            # (ndf,)
    var_y1 = jnp.einsum("ij,jk,ik->i", w1, cov_x, w1)     # diag(W1 Cov W1^T)
    var_y1 = jnp.maximum(var_y1, 0.0)                     # guard fp cancellation
    scale = gamma * lax.rsqrt(var_y1 + eps)               # gamma / std
    shift = beta + scale * (b1 - mean_y1)                 # conv1 bias + BN folded

    w1s = (scale[:, None] * w1).astype(compute_dtype)     # (ndf, C) BN-scaled W1
    w2c = w2.astype(compute_dtype)                        # (out_c, ndf)
    shift2 = shift.reshape(ndf, 1).astype(jnp.float32)
    b2c = b2.reshape(out_c, 1).astype(jnp.float32)

    # ----- pass 2: conv1 + BN + ReLU + conv2, direct NCHW output --------------
    out_isz = jnp.dtype(out_dtype).itemsize
    vmem_est = (2 * C * ts * 4 + 2 * out_c * ts * out_isz
                + 3 * ndf * ts * 4 + out_c * ts * 4 + (1 << 20))
    vmem_limit = int(min(max(2 * vmem_est, 8 << 20), 32 << 20))

    out3 = pl.pallas_call(
        functools.partial(_apply_kernel, compute_dtype=compute_dtype),
        out_shape=jax.ShapeDtypeStruct((N, out_c, hwp), out_dtype),
        grid_spec=pltpu.PrefetchScalarGridSpec(
            num_scalar_prefetch=0,
            grid=grid,
            in_specs=[
                x_spec,                                    # (C, ts) input tile
                pl.BlockSpec((ndf, C), const2),            # BN-scaled W1
                pl.BlockSpec((ndf, 1), const2),            # folded shift
                pl.BlockSpec((out_c, ndf), const2),        # W2
                pl.BlockSpec((out_c, 1), const2),          # b2
            ],
            out_specs=pl.BlockSpec((None, out_c, ts), lambda n, t: (n, 0, t)),
        ),
        compiler_params=pltpu.CompilerParams(
            dimension_semantics=("parallel", "parallel"),
            vmem_limit_bytes=vmem_limit,
        ),
    )(x3, w1s, shift2, w2c, b2c)

    if hwp != hw:
        out3 = out3[:, :, :hw]
    return out3.reshape(N, out_c, H, W)


# ---------------------------------------------------------------------------
# Pure-JAX reference (matches PyTorch training-mode forward)
# ---------------------------------------------------------------------------

def project_head_reference(x_nchw, params, *, eps=1e-5):
    w1, b1, gamma, beta, w2, b2 = (params["w1"], params["b1"], params["gamma"],
                                   params["beta"], params["w2"], params["b2"])
    N, C, H, W = x_nchw.shape
    xm = jnp.transpose(x_nchw, (0, 2, 3, 1)).reshape(-1, C)
    y1 = xm @ w1.T + b1
    mean = jnp.mean(y1, axis=0)
    var = jnp.mean((y1 - mean) ** 2, axis=0)          # biased, as BN uses
    yn = (y1 - mean) / jnp.sqrt(var + eps) * gamma + beta
    yr = jnp.maximum(yn, 0.0)
    y2 = yr @ w2.T + b2
    return jnp.transpose(y2.reshape(N, H, W, w2.shape[0]), (0, 3, 1, 2))


def make_params(key, ndf=64, class_num=4):
    k1, k2, k3, k4, k5, k6 = jax.random.split(key, 6)
    w1 = jax.random.normal(k1, (ndf, class_num), jnp.float32) * 0.2
    b1 = jax.random.normal(k2, (ndf,), jnp.float32) * 0.05
    gamma = 1.0 + 0.1 * jax.random.normal(k3, (ndf,), jnp.float32)
    beta = 0.05 * jax.random.normal(k4, (ndf,), jnp.float32)
    w2 = jax.random.normal(k5, (2 * ndf, ndf), jnp.float32) * 0.1
    b2 = jax.random.normal(k6, (2 * ndf,), jnp.float32) * 0.05
    return {"w1": w1, "b1": b1, "gamma": gamma, "beta": beta,
            "w2": w2, "b2": b2}


if __name__ == "__main__":
    ndf, class_num = 64, 4
    key = jax.random.PRNGKey(0)
    kx, kp, kx2 = jax.random.split(key, 3)
    params = make_params(kp, ndf=ndf, class_num=class_num)

    # Aligned case: N=2, C=4, H=W=16 (H*W = 256, multiple of 128 lanes).
    x = jax.random.normal(kx, (2, class_num, 16, 16), jnp.float32)
    ref = jax.block_until_ready(project_head_reference(x, params))

    out = jax.block_until_ready(project_head_forward(x, params))
    assert out.shape == (2, 2 * ndf, 16, 16), out.shape
    assert jnp.allclose(out, ref, atol=1e-4, rtol=1e-4), float(
        jnp.max(jnp.abs(out - ref)))

    # bf16 matmul path (BN stats stay f32; f32 accumulation): looser check.
    out_bf16 = jax.block_until_ready(
        project_head_forward(x, params, compute_dtype=jnp.bfloat16))
    assert jnp.allclose(out_bf16, ref, atol=1e-1, rtol=1e-1), float(
        jnp.max(jnp.abs(out_bf16 - ref)))

    # Unaligned spatial size exercises the zero-pad + slice path (robust tiling).
    x_odd = jax.random.normal(kx2, (2, class_num, 9, 9), jnp.float32)
    ref_odd = jax.block_until_ready(project_head_reference(x_odd, params))
    out_odd = jax.block_until_ready(project_head_forward(x_odd, params))
    assert out_odd.shape == (2, 2 * ndf, 9, 9), out_odd.shape
    assert jnp.allclose(out_odd, ref_odd, atol=1e-4, rtol=1e-4), float(
        jnp.max(jnp.abs(out_odd - ref_odd)))

    print("KERNEL_OK")
</pallas_src>

<mosaic_0001>
module attributes {stable_mosaic.version = 11 : i64} {
  func.func @_stats_kernel(%arg0: i32, %arg1: i32, %arg2: memref<1x4x256xf32, #tpu.memory_space<vmem>>, %arg3: memref<1x1x4x4xf32, #tpu.memory_space<vmem>>, %arg4: memref<1x1x4x1xf32, #tpu.memory_space<vmem>>) attributes {dimension_semantics = [#tpu.dimension_semantics<parallel>, #tpu.dimension_semantics<parallel>], iteration_bounds = array<i64: 2, 1>, scalar_prefetch = 0 : i64, scratch_operands = 0 : i64, tpu.core_type = #tpu.core_type<tc>, window_params = [{transform_indices = @transform_0, window_bounds = array<i64: 1, 4, 256>}, {transform_indices = @transform_1, window_bounds = array<i64: 1, 1, 4, 4>}, {transform_indices = @transform_2, window_bounds = array<i64: 1, 1, 4, 1>}]} {
    %c0 = arith.constant 0 : index
    %c0_0 = arith.constant 0 : index
    %c0_1 = arith.constant 0 : index
    %0 = vector.load %arg2[%c0, %c0_0, %c0_1] : memref<1x4x256xf32, #tpu.memory_space<vmem>>, vector<1x4x256xf32>
    %1 = vector.shape_cast %0 : vector<1x4x256xf32> to vector<4x256xf32>
    %cst = arith.constant dense<0.000000e+00> : vector<4x4xf32>
    %2 = tpu.matmul %1, %1, %cst {dimension_numbers = #tpu.dot_dimension_numbers<[1], [1], [0], [0], [0, 0, 1, 0], [], []>} : vector<4x256xf32>, vector<4x256xf32>, vector<4x4xf32> -> vector<4x4xf32>
    %c0_2 = arith.constant 0 : index
    %c0_3 = arith.constant 0 : index
    %c0_4 = arith.constant 0 : index
    %c0_5 = arith.constant 0 : index
    %3 = vector.load %arg3[%c0_2, %c0_3, %c0_4, %c0_5] : memref<1x1x4x4xf32, #tpu.memory_space<vmem>>, vector<1x1x4x4xf32>
    %4 = vector.shape_cast %3 : vector<1x1x4x4xf32> to vector<4x4xf32>
    %5 = vector.shape_cast %2 : vector<4x4xf32> to vector<1x1x4x4xf32>
    tpu.vector_store %arg3[%c0_2, %c0_3, %c0_4, %c0_5], %5 {strides = array<i32>} : memref<1x1x4x4xf32, #tpu.memory_space<vmem>>, vector<1x1x4x4xf32>,
    %cst_6 = arith.constant dense<0.000000e+00> : vector<4xf32>
    %6 = vector.multi_reduction <add>, %1, %cst_6 [1] : vector<4x256xf32> to vector<4xf32>
    %7 = vector.shape_cast %6 : vector<4xf32> to vector<4x1xf32>
    %c0_7 = arith.constant 0 : index
    %c0_8 = arith.constant 0 : index
    %c0_9 = arith.constant 0 : index
    %c0_10 = arith.constant 0 : index
    %8 = vector.load %arg4[%c0_7, %c0_8, %c0_9, %c0_10] : memref<1x1x4x1xf32, #tpu.memory_space<vmem>>, vector<1x1x4x1xf32>
    %9 = vector.shape_cast %8 : vector<1x1x4x1xf32> to vector<4x1xf32>
    %10 = vector.shape_cast %7 : vector<4x1xf32> to vector<1x1x4x1xf32>
    tpu.vector_store %arg4[%c0_7, %c0_8, %c0_9, %c0_10], %10 {strides = array<i32>} : memref<1x1x4x1xf32, #tpu.memory_space<vmem>>, vector<1x1x4x1xf32>,
    return
  }
  func.func @transform_0(%arg0: i32, %arg1: i32) -> (i32, i32, i32) {
    %c0_i32 = arith.constant 0 : i32
    %c0_i32_0 = arith.constant 0 : i32
    return %arg0, %c0_i32, %arg1 : i32, i32, i32
  }
  func.func @transform_1(%arg0: i32, %arg1: i32) -> (i32, i32, i32, i32) {
    %c0_i32 = arith.constant 0 : i32
    %c0_i32_0 = arith.constant 0 : i32
    %c0_i32_1 = arith.constant 0 : i32
    return %arg0, %arg1, %c0_i32, %c0_i32_0 : i32, i32, i32, i32
  }
  func.func @transform_2(%arg0: i32, %arg1: i32) -> (i32, i32, i32, i32) {
    %c0_i32 = arith.constant 0 : i32
    %c0_i32_0 = arith.constant 0 : i32
    %c0_i32_1 = arith.constant 0 : i32
    return %arg0, %arg1, %c0_i32, %c0_i32_0 : i32, i32, i32, i32
  }
}

</mosaic_0001>

<llo_original>
// kernel: tpu_custom_call.1
$region0: #{tpu_custom_call.1}
  #allocation0 [shape = 'u32[]', space=smem, size = 0x4, offset = 0x4, fixed_abs, tag = 'smem constant byte address 0x4 - core index']
  #allocation1 [shape = 'u32[144,128]{1,0:T(1,128)}', space=vmem, size = 0x12000, scoped, tag = 'internal scratch']
  %s0 = inlined_call_operand.hbm [shape: f32[2,4,256], index: 0, kind: input, shape index: {}]
  %s1 = inlined_call_operand.hbm [shape: f32[2,1,4,4], index: 1, kind: output, shape index: {0}]
  %s2 = inlined_call_operand.vmem [shape: f32[2,1,4,1], index: 2, kind: output, shape index: {1}]
  %3 = xla_tuple %s1, %s2
  %s4 = sld [smem:[#allocation0]]
  $region49: #{tpu_custom_call.1} parent=0
    _
  %s6 = ssub.s32 1, %s4
  %s7 = scalar_select 0, %s6, %s4
  $region1: #{tpu_custom_call.1} parent=0
    #allocation2 [shape = 'u8[8192]{0}', space=vmem, size = 0x2000, scoped, tag = 'input window, operand 0']
    #allocation3 [shape = 's32[2]{0}', space=sflag, size = 0x8, scoped, tag = 'scoped memory for tpu_custom_call.1']
    #allocation4 [shape = 's32[2]{0}', space=sflag, size = 0x8, scoped, tag = 'scoped memory for tpu_custom_call.1']
    #allocation5 [shape = 'u8[4096]{0}', space=vmem, size = 0x1000, scoped, tag = 'output window, operand 0']
    %8 = vsyncpa [#allocation3], 0
    %s9 = scalar_lea.sflag [#allocation3], 1
    %10 = vsyncpa %s9, 0
    %11 = vsyncpa [#allocation4], 0
    %s12 = scalar_lea.sflag [#allocation4], 1
    %13 = vsyncpa %s12, 0
    loop: start=0, step=1, limit=4
    $region2: #{tpu_custom_call.1} parent=1 // loop_pre_header
      _
    $region3: #{tpu_custom_call.1} parent=1 // loop_header
      %s15 = sphi 0, %s19
      %p16 = scmp.ge.s32.totalorder %s15, 4
      %s22 = sphi 0, %s34
      %s23 = sphi 0, %s30
      %s24 = sphi 0, %s22
      %s25 = sphi 0, %s23
      %s26 = sphi 0, %s24
      %s27 = sphi 0, %s25
      %s39 = sphi 0, %s41
      %s42 = sphi 0, %s39
      %s43 = sphi 0, %s42
      %s59 = sphi 0, %s43
      %s67 = sphi 0, %s69
      %s70 = sphi 0, %s67
      %s71 = sphi 0, %s70
      %s87 = sphi 0, %s71
      %s95 = sphi 0, %s97
      %s98 = sphi 0, %s95
      %s99 = sphi 0, %s98
      %s115 = sphi 0, %s99
    $region4: #{tpu_custom_call.1} parent=1 // loop_header_branch
      %18 = sbr.rel (%p16) target = $region8
    $region5: #{tpu_custom_call.1} parent=1 // loop_body
      %s20 = ssub.s32 %s15, 1
      %s21 = ssub.s32 %s15, 2
      %s28 = sadd.s32 1, %s23
      %p29 = scmp.ge.s32.totalorder %s28, 1
      %s30 = scalar_select %p29, 0, %s28
      %s31 = sadd.s32 1, %s22
      %s32 = scalar_select %p29, %s31, %s22
      %p33 = scmp.ge.s32.totalorder %s32, 2
      %s34 = scalar_select %p33, 0, %s32
      %s35 = ssub.s32 %s22, %s34
      %s36 = ssub.s32 %s23, %s30
      %s37 = sor.u32 %s35, %s36
      %p38 = scmp.eq.s32.totalorder %s37, 0
      %s40 = sadd.s32 %s39, 1
      %s41 = scalar_select %p38, %s39, %s40
      %p44 = pneg %p38
      %p45 = scmp.eq.s32.totalorder %s15, 1
      %p46 = por %p44, %p45
      %p47 = scmp.ne.s32.totalorder %s39, %s42
      %p48 = scmp.eq.s32.totalorder %s15, 0
      %p49 = por %p47, %p48
      %p50 = scmp.ne.s32.totalorder %s39, %s42
      %p51 = scmp.eq.s32.totalorder %s20, 1
      %p52 = por %p50, %p51
      %p53 = scmp.ne.s32.totalorder %s42, %s43
      %p54 = scmp.eq.s32.totalorder %s20, 0
      %p55 = por %p53, %p54
      %p56 = scmp.ne.s32.totalorder %s42, %s43
      %p57 = scmp.eq.s32.totalorder %s21, 1
      %p58 = por %p56, %p57
      %p60 = scmp.ne.s32.totalorder %s43, %s59
      %p61 = scmp.eq.s32.totalorder %s21, 0
      %p62 = por %p60, %p61
      %s63 = ssub.s32 %s22, %s34
      %s64 = ssub.s32 %s23, %s30
      %s65 = sor.u32 %s63, %s64
      %p66 = scmp.eq.s32.totalorder %s65, 0
      %s68 = sadd.s32 %s67, 1
      %s69 = scalar_select %p66, %s67, %s68
      %p72 = pneg %p66
      %p73 = scmp.eq.s32.totalorder %s15, 1
      %p74 = por %p72, %p73
      %p75 = scmp.ne.s32.totalorder %s67, %s70
      %p76 = scmp.eq.s32.totalorder %s15, 0
      %p77 = por %p75, %p76
      %p78 = scmp.ne.s32.totalorder %s67, %s70
      %p79 = scmp.eq.s32.totalorder %s20, 1
      %p80 = por %p78, %p79
      %p81 = scmp.ne.s32.totalorder %s70, %s71
      %p82 = scmp.eq.s32.totalorder %s20, 0
      %p83 = por %p81, %p82
      %p84 = scmp.ne.s32.totalorder %s70, %s71
      %p85 = scmp.eq.s32.totalorder %s21, 1
      %p86 = por %p84, %p85
      %p88 = scmp.ne.s32.totalorder %s71, %s87
      %p89 = scmp.eq.s32.totalorder %s21, 0
      %p90 = por %p88, %p89
      %s91 = ssub.s32 %s22, %s34
      %s92 = ssub.s32 %s23, %s30
      %s93 = sor.u32 %s91, %s92
      %p94 = scmp.eq.s32.totalorder %s93, 0
      %s96 = sadd.s32 %s95, 1
      %s97 = scalar_select %p94, %s95, %s96
      %p100 = pneg %p94
      %p101 = scmp.eq.s32.totalorder %s15, 1
      %p102 = por %p100, %p101
      %p103 = scmp.ne.s32.totalorder %s95, %s98
      %p104 = scmp.eq.s32.totalorder %s15, 0
      %p105 = por %p103, %p104
      %p106 = scmp.ne.s32.totalorder %s95, %s98
      %p107 = scmp.eq.s32.totalorder %s20, 1
      %p108 = por %p106, %p107
      %p109 = scmp.ne.s32.totalorder %s98, %s99
      %p110 = scmp.eq.s32.totalorder %s20, 0
      %p111 = por %p109, %p110
      %p112 = scmp.ne.s32.totalorder %s98, %s99
      %p113 = scmp.eq.s32.totalorder %s21, 1
      %p114 = por %p112, %p113
      %p116 = scmp.ne.s32.totalorder %s99, %s115
      %p117 = scmp.eq.s32.totalorder %s21, 0
      %p118 = por %p116, %p117
      %p119 = scmp.le.s32.totalorder 1, %s15
      %p120 = scmp.lt.s32.totalorder %s15, 3
      %p121 = pnand %p119, %p120
      %p122 = pneg %p121
      // Predicated region
      $region9: #{tpu_custom_call.1} parent=5 // pred_check
        _
      $region10: #{tpu_custom_call.1} parent=5 // pred_check_branch
        %124 = sbr.rel (%p121) target = $region12
      $region11: #{tpu_custom_call.1} parent=5 // pred_region
        %s125 = ssub.s32 %s15, 1
      $region12: #{tpu_custom_call.1} parent=5 // pred_fallthru
        _
      %p126 = scmp.lt.s32.totalorder %s15, 2
      // Predicated region
      $region13: #{tpu_custom_call.1} parent=5 // pred_check
        %p127 = pneg %p126
      $region14: #{tpu_custom_call.1} parent=5 // pred_check_branch
        %129 = sbr.rel (%p127) target = $region16
      $region15: #{tpu_custom_call.1} parent=5 // pred_region
        // Predicated region
        $region17: #{tpu_custom_call.1} parent=15 // pred_check
          %p130 = pneg %p49
        $region18: #{tpu_custom_call.1} parent=15 // pred_check_branch
          %132 = sbr.rel (%p130) target = $region20
        $region19: #{tpu_custom_call.1} parent=15 // pred_region
          %s133 = sand.u32 %s39, 1
          %s134 = scalar_lea.sflag [#allocation3], %s133
          %s135 = sand.u32 %s39, 1
          %s136 = smul.addr %s135, 8
          %s137 = scalar_lea.vmem [#allocation2], %s136
          %s138 = smul.u32 2, %s23
          %s140 = ssub.s32 128, 128
          %141 = vsyncadd %s134, %s140
          %s142 = smul.addr %s22, 2
          %s143 = sadd.s32 %s138, %s142
          %s144 = smul.addr %s143, 64
          %s145 = scalar_lea.hbm %s0, %s144
          %s147 = sshll.u32 %s137, 4
          %s148 = int_to_ptr.vmem [resolvable:$true] %s147
          %150 = dma.hbm_to_vmem [thread:$0]  %s145, 128, %s148, %s134
        $region20: #{tpu_custom_call.1} parent=15 // pred_fallthru
          _
      $region16: #{tpu_custom_call.1} parent=5 // pred_fallthru
        _
      %p151 = scmp.le.s32.totalorder 1, %s15
      %p152 = scmp.lt.s32.totalorder %s15, 3
      %p153 = pnand %p151, %p152
      %p154 = pneg %p153
      // Predicated region
      $region21: #{tpu_custom_call.1} parent=5 // pred_check
        _
      $region22: #{tpu_custom_call.1} parent=5 // pred_check_branch
        %156 = sbr.rel (%p153) target = $region24
      $region23: #{tpu_custom_call.1} parent=5 // pred_region
        %s157 = ssub.s32 %s15, 1
        %s158 = sand.u32 %s42, 1
        %s159 = scalar_lea.sflag [#allocation3], %s158
        %s160 = sand.u32 %s42, 1
        %s161 = smul.addr %s160, 8
        %s162 = scalar_lea.vmem [#allocation2], %s161
        // Predicated region
        $region25: #{tpu_custom_call.1} parent=23 // pred_check
          %p163 = pneg %p55
        $region26: #{tpu_custom_call.1} parent=23 // pred_check_branch
          %165 = sbr.rel (%p163) target = $region28
        $region27: #{tpu_custom_call.1} parent=23 // pred_region
          %166 = dma.done %s159, 128
        $region28: #{tpu_custom_call.1} parent=23 // pred_fallthru
          _
        %s167 = sand.u32 %s42, 1
        %s168 = scalar_lea.sflag [#allocation3], %s167
        %s169 = sand.u32 %s42, 1
        %s170 = smul.addr %s169, 8
        %s171 = scalar_lea.vmem [#allocation2], %s170
        %p172 = pneg %p55
        %p173 = pneg %p52
        %p174 = pneg %p83
        %p175 = pneg %p80
        %s176 = sand.u32 %s70, 1
        %s177 = scalar_lea.sflag [#allocation4], %s176
        %s178 = sand.u32 %s70, 1
        %s179 = smul.addr %s178, 4
        %s180 = scalar_lea.vmem [#allocation5], %s179
        %p181 = pneg %p111
        %p182 = pneg %p108
        %p183 = scmp.lt.s32.totalorder %s24, 1
        %s184 = scalar_select %p183, %s24, 1
        %p185 = scmp.lt.s32.totalorder %s25, 0
        %s186 = scalar_select %p185, %s25, 0
        %s187 = sadd.s32 %s186, %s184
        %s188 = smul.addr %s187, 4
        %s189 = scalar_lea.vmem %s2, %s188
        %s190 = smul.u32 2, %s25
        %p191 = scmp.lt.s32.totalorder %s24, 1
        %s192 = scalar_select %p191, %s24, 1
        %p193 = scmp.lt.s32.totalorder %s25, 0
        %s194 = scalar_select %p193, %s25, 0
        %s195 = sadd.s32 %s194, %s192
        %s196 = smul.addr %s195, 4
        %s197 = scalar_lea.vmem %s2, %s196
        %v198 = vld [vmem:[%s162] sm:$0xff]
        %v200 = vcombine.high %v198, %v198
        %202 = vmatprep.subr.mxu0 0.0
        %203 = vmatpush1.xpose.msra.mxu0 0.0
        %204 = vmatprep.subr.mxu0 0.0
        %205 = vmatpush1.xpose.msra.mxu0 0.0
        %206 = vmatprep.subr.mxu0 0.0
        %207 = vmatpush1.xpose.msra.mxu0 0.0
        %208 = vmatprep.subr.mxu0 0.0
        %209 = vmatpush1.xpose.msra.mxu0 0.0
        %210 = vmatprep.subr.mxu0 0.0
        %211 = vmatpush1.xpose.msra.mxu0 0.0
        %212 = vmatprep.subr.mxu0 0.0
        %213 = vmatpush1.xpose.msra.mxu0 0.0
        %214 = vmatprep.subr.mxu0 0.0
        %215 = vmatpush1.xpose.msra.mxu0 0.0
        %216 = vmatprep.subr.mxu0 0.0
        %217 = vmatpush1.xpose.msra.mxu0 0.0
        %218 = vmatprep.subr.mxu0 0.0
        %219 = vmatpush1.xpose.msra.mxu0 0.0
        %220 = vmatprep.subr.mxu0 0.0
        %221 = vmatpush1.xpose.msra.mxu0 0.0
        %222 = vmatprep.subr.mxu0 0.0
        %223 = vmatpush1.xpose.msra.mxu0 0.0
        %224 = vmatprep.subr.mxu0 0.0
        %225 = vmatpush1.xpose.msra.mxu0 0.0
        %226 = vmatprep.subr.mxu0 0.0
        %227 = vmatpush1.xpose.msra.mxu0 0.0
        %228 = vmatprep.subr.mxu0 0.0
        %229 = vmatpush1.xpose.msra.mxu0 0.0
        %230 = vmatprep.subr.mxu0 0.0
        %231 = vmatpush1.xpose.msra.mxu0 0.0
        %232 = vmatprep.subr.mxu0 %v200
        %233 = vmatpush1.xpose.msra.mxu0 %v198
        %234 = vmatprep.subr.mxu0 0.0
        %235 = vmatpush2.xpose.msra.mxu0 0.0
        %236 = vmatprep.subr.mxu0 0.0
        %237 = vmatpush2.xpose.msra.mxu0 0.0
        %238 = vmatprep.subr.mxu0 0.0
        %239 = vmatpush2.xpose.msra.mxu0 0.0
        %240 = vmatprep.subr.mxu0 0.0
        %241 = vmatpush2.xpose.msra.mxu0 0.0
        %242 = vmatprep.subr.mxu0 0.0
        %243 = vmatpush2.xpose.msra.mxu0 0.0
        %244 = vmatprep.subr.mxu0 0.0
        %245 = vmatpush2.xpose.msra.mxu0 0.0
        %246 = vmatprep.subr.mxu0 0.0
        %247 = vmatpush2.xpose.msra.mxu0 0.0
        %248 = vmatprep.subr.mxu0 0.0
        %249 = vmatpush2.xpose.msra.mxu0 0.0
        %250 = vmatprep.subr.mxu0 0.0
        %251 = vmatpush2.xpose.msra.mxu0 0.0
        %252 = vmatprep.subr.mxu0 0.0
        %253 = vmatpush2.xpose.msra.mxu0 0.0
        %254 = vmatprep.subr.mxu0 0.0
        %255 = vmatpush2.xpose.msra.mxu0 0.0
        %256 = vmatprep.subr.mxu0 0.0
        %257 = vmatpush2.xpose.msra.mxu0 0.0
        %258 = vmatprep.subr.mxu0 0.0
        %259 = vmatpush2.xpose.msra.mxu0 0.0
        %260 = vmatprep.subr.mxu0 0.0
        %261 = vmatpush2.xpose.msra.mxu0 0.0
        %262 = vmatprep.subr.mxu0 0.0
        %263 = vmatpush2.xpose.msra.mxu0 0.0
        %264 = vmatprep.subr.mxu0 0.0
        %265 = vmatpush2.xpose.msra.mxu0 0.0
        %266 = vmatprep.mubr.f32.mxu0 %v200
        %267 = vmatmul.mubr.f32.gmra.mxu0 %v198
        %v268 = vpop.f32.mrf.mxu0
        %v269 = vadd.f32 0.0, %v268
        %v270 = vpop.f32.mrf.mxu0
        %271 = vdwg.mxu0
        %vm272 = vcmask 27648
        %273 = vst.msk [vmem:[%s180] sm:$0xf] %vm272, %v269
        %vm274 = vcmask 1043456
        %v275 = vsel %vm274, %v198, 0.0
        %v276 = vsel %vm274, %v200, 0.0
        %v277 = vadd.f32 %v275, %v276
        %278 = vadd.xlane.f32.xlu0 %v277
        %v279 = vpop.xlane.xlu0 %278
        %vm280 = vcmask 3072
        %281 = vst.msk [vmem:[%s197] sm:$0xf] %vm280, %v279
        %s282 = sand.u32 %s70, 1
        %s283 = scalar_lea.sflag [#allocation4], %s282
        %s284 = sand.u32 %s70, 1
        %s285 = smul.addr %s284, 4
        %s286 = scalar_lea.vmem [#allocation5], %s285
        %p287 = scmp.lt.s32.totalorder %s24, 1
        %s288 = scalar_select %p287, %s24, 1
        %p289 = scmp.lt.s32.totalorder %s25, 0
        %s290 = scalar_select %p289, %s25, 0
        %s291 = sadd.s32 %s290, %s288
        %s292 = smul.addr %s291, 4
        %s293 = scalar_lea.vmem %s2, %s292
        // Predicated region
        $region29: #{tpu_custom_call.1} parent=23 // pred_check
          %p294 = pneg %p80
        $region30: #{tpu_custom_call.1} parent=23 // pred_check_branch
          %296 = sbr.rel (%p294) target = $region32
        $region31: #{tpu_custom_call.1} parent=23 // pred_region
          %s298 = ssub.s32 64, 64
          %299 = vsyncadd %s283, %s298
          %s300 = sadd.s32 %s25, %s24
          %s301 = smul.addr %s300, 64
          %s302 = scalar_lea.hbm %s1, %s301
          %s304 = sshll.u32 %s286, 4
          %s305 = int_to_ptr.vmem [resolvable:$true] %s304
          %307 = dma.vmem_to_hbm [thread:$0]  %s305, 64, %s302, %s283
        $region32: #{tpu_custom_call.1} parent=23 // pred_fallthru
          _
        // Predicated region
        $region33: #{tpu_custom_call.1} parent=23 // pred_check
          %p308 = pneg %p108
        $region34: #{tpu_custom_call.1} parent=23 // pred_check_branch
          %310 = sbr.rel (%p308) target = $region36
        $region35: #{tpu_custom_call.1} parent=23 // pred_region
          _
        $region36: #{tpu_custom_call.1} parent=23 // pred_fallthru
          _
      $region24: #{tpu_custom_call.1} parent=5 // pred_fallthru
        _
      %p311 = scmp.le.s32.totalorder 2, %s15
      // Predicated region
      $region37: #{tpu_custom_call.1} parent=5 // pred_check
        %p312 = pneg %p311
      $region38: #{tpu_custom_call.1} parent=5 // pred_check_branch
        %314 = sbr.rel (%p312) target = $region40
      $region39: #{tpu_custom_call.1} parent=5 // pred_region
        %s315 = ssub.s32 %s15, 2
        // Predicated region
        $region41: #{tpu_custom_call.1} parent=39 // pred_check
          %p316 = pneg %p86
        $region42: #{tpu_custom_call.1} parent=39 // pred_check_branch
          %318 = sbr.rel (%p316) target = $region44
        $region43: #{tpu_custom_call.1} parent=39 // pred_region
          %s319 = sand.u32 %s71, 1
          %s320 = scalar_lea.sflag [#allocation4], %s319
          %s321 = sand.u32 %s71, 1
          %s322 = smul.addr %s321, 4
          %s323 = scalar_lea.vmem [#allocation5], %s322
          %324 = dma.done %s320, 64
        $region44: #{tpu_custom_call.1} parent=39 // pred_fallthru
          _
        // Predicated region
        $region45: #{tpu_custom_call.1} parent=39 // pred_check
          %p325 = pneg %p114
        $region46: #{tpu_custom_call.1} parent=39 // pred_check_branch
          %327 = sbr.rel (%p325) target = $region48
        $region47: #{tpu_custom_call.1} parent=39 // pred_region
          %p328 = scmp.lt.s32.totalorder %s26, 1
          %s329 = scalar_select %p328, %s26, 1
          %p330 = scmp.lt.s32.totalorder %s27, 0
          %s331 = scalar_select %p330, %s27, 0
          %s332 = sadd.s32 %s331, %s329
          %s333 = smul.addr %s332, 4
          %s334 = scalar_lea.vmem %s2, %s333
        $region48: #{tpu_custom_call.1} parent=39 // pred_fallthru
          _
      $region40: #{tpu_custom_call.1} parent=5 // pred_fallthru
        _
    $region6: #{tpu_custom_call.1} parent=1 // loop_footer
      %s19 = sadd.s32 1, %s15
    $region7: #{tpu_custom_call.1} parent=1 // loop_footer_branch
      %14 = sbr.rel target = $region3
    $region8: #{tpu_custom_call.1} parent=1 // loop_exit
      _
    %335 = vsyncpa [#allocation3], 1
    %s336 = scalar_lea.sflag [#allocation3], 1
    %337 = vsyncpa %s336, 1
    %338 = vsyncpa [#allocation4], 1
    %s339 = scalar_lea.sflag [#allocation4], 1
    %340 = vsyncpa %s339, 1

</llo_original>
